<compile_context>
chip_gen: v7x
topology: tpu7x:2x2x1
jax: 0.10.0
libtpu: 0.0.40
codegen_flags: <defaults>
</compile_context>

<pallas_src>
import functools

import jax
import jax.numpy as jnp
from jax.experimental import pallas as pl
from jax.experimental.pallas import tpu as pltpu


# ----------------------------------------------------------------------------
# Pallas kernel: 3x3 same-conv (stride 1), one batch element per grid step.
# ----------------------------------------------------------------------------
def _deconv3x3_kernel(x_ref, w_ref, b_ref, o_ref, xf_ref, patch_ref, *, H, W):
    # x_ref:     (1, Cin, H*W)       flattened NCHW activation block
    # w_ref:     (Cout, 9*Cin)       fused weight, col index = (kh*3+kw)*Cin + ci
    # b_ref:     (Cout, 1)           bias column (f32)
    # o_ref:     (1, Cout, H*W)      lane-dense output block (H*W on lanes)
    # xf_ref:    (Cin, (H+2)*W + 2)  zero-padded flat image scratch (halo in VMEM)
    # patch_ref: (9*Cin, H*W)        im2col patch matrix scratch
    cin = x_ref.shape[1]
    hw = x_ref.shape[2]
    pad = W + 1  # offset of pixel (0, 0) inside the flat padded buffer

    # Build the halo in VMEM: zero the buffer, drop the image in the middle.
    # (Replaces the host-side jnp.pad -> no extra HBM round trip.)
    xf_ref[...] = jnp.zeros_like(xf_ref)
    xf_ref[:, pad:pad + hw] = x_ref[0]

    # Column index (w) of every flattened output position; only the horizontal
    # wrap-around needs masking -- the vertical halo reads the zero pad.
    w_idx = jax.lax.broadcasted_iota(jnp.int32, (cin, hw), 1) % W

    # im2col-lite: each tap (kh, kw) is a contiguous lane-shifted view of the
    # flat padded image:  xf[pad + (h+kh-1)*W + (w+kw-1)] == xf[(kh*W+kw) + hw].
    for kh in range(3):
        for kw in range(3):
            t = kh * 3 + kw
            start = kh * W + kw
            tap = xf_ref[:, start:start + hw]
            if kw == 0:                     # x[.., w-1] invalid at w == 0
                tap = jnp.where(w_idx >= 1, tap, 0.0)
            elif kw == 2:                   # x[.., w+1] invalid at w == W-1
                tap = jnp.where(w_idx <= W - 2, tap, 0.0)
            patch_ref[t * cin:(t + 1) * cin, :] = tap

    # Single fused MXU contraction: (Cout, 9*Cin) @ (9*Cin, H*W), f32 accum.
    acc = jnp.dot(w_ref[...], patch_ref[...],
                  preferred_element_type=jnp.float32)
    acc = acc + b_ref[...]                  # bias broadcast over the lane axis
    o_ref[0] = acc.astype(o_ref.dtype)


def deconv_forward(x_nchw, w_oihw, bias):
    """Fused DEConv forward: 3x3 stride-1 'same' conv, NCHW in / NCHW out."""
    N, Cin, H, W = x_nchw.shape
    Cout = w_oihw.shape[0]
    HW = H * W

    # Free row-major reshapes only (no transposes, no extra HBM passes).
    x_flat = x_nchw.reshape(N, Cin, HW)
    # Weight as (Cout, 9*Cin) with columns ordered (kh, kw, ci) to match the
    # patch-matrix rows. Tiny one-off parameter transform.
    w_mat = jnp.transpose(w_oihw, (0, 2, 3, 1)).reshape(Cout, 9 * Cin)
    w_mat = w_mat.astype(x_nchw.dtype)
    b_col = bias.reshape(Cout, 1).astype(jnp.float32)

    # Rough per-grid-step VMEM footprint (double-buffered in/out blocks + scratch).
    itm = x_nchw.dtype.itemsize
    step_bytes = (2 * Cin * HW + 2 * Cout * HW) * itm \
        + (9 * Cin * HW + Cin * ((H + 2) * W + 2)) * itm \
        + 9 * Cin * Cout * itm + 4 * Cout
    if step_bytes > 24 * 1024 * 1024:
        # TODO(synk): add an H-tiled grid axis with halo DMA (make_async_copy)
        # so large images fit v7x's 64 MiB VMEM; not needed at these shapes.
        raise NotImplementedError("image too large for single-block DEConv kernel")

    kernel = functools.partial(_deconv3x3_kernel, H=H, W=W)

    out_flat = pl.pallas_call(
        kernel,
        out_shape=jax.ShapeDtypeStruct((N, Cout, HW), x_nchw.dtype),
        grid_spec=pltpu.PrefetchScalarGridSpec(
            num_scalar_prefetch=0,
            grid=(N,),
            in_specs=[
                pl.BlockSpec((1, Cin, HW), lambda n: (n, 0, 0)),
                # Constant index_map -> weight/bias blocks stay resident.
                pl.BlockSpec((Cout, 9 * Cin), lambda n: (0, 0)),
                pl.BlockSpec((Cout, 1), lambda n: (0, 0)),
            ],
            out_specs=pl.BlockSpec((1, Cout, HW), lambda n: (n, 0, 0)),
            scratch_shapes=[
                pltpu.VMEM((Cin, (H + 2) * W + 2), x_nchw.dtype),  # padded image
                pltpu.VMEM((9 * Cin, HW), x_nchw.dtype),           # patch matrix
            ],
        ),
        compiler_params=pltpu.CompilerParams(
            dimension_semantics=("parallel",),        # megacore across batch
            vmem_limit_bytes=32 * 1024 * 1024,        # explicit (v7x-safe) budget
        ),
    )(x_flat, w_mat, b_col)

    return out_flat.reshape(N, Cout, H, W)


# ----------------------------------------------------------------------------
# Parameter setup (plain JAX glue) — mirrors DEConv.__init__ / get_weight().
# ----------------------------------------------------------------------------
def make_deconv_params(dim, key):
    k = jax.random.split(key, 6)
    # Conv2d_cd: nn.Conv2d(dim, dim, 3) weight (O, I, 3, 3), bias (O,)
    w_cd_base = jax.random.normal(k[0], (dim, dim, 3, 3), jnp.float32) * 0.1
    b1 = jax.random.normal(k[1], (dim,), jnp.float32) * 0.1
    # Conv2d_hd: nn.Conv1d(dim, dim, 3) weight (O, I, 3), bias (O,)
    w_hd_base = jax.random.normal(k[2], (dim, dim, 3), jnp.float32) * 0.1
    b2 = jax.random.normal(k[3], (dim,), jnp.float32) * 0.1
    # conv1_5: nn.Conv2d(dim, dim, 3) weight (O, I, 3, 3), bias (O,)
    w5 = jax.random.normal(k[4], (dim, dim, 3, 3), jnp.float32) * 0.1
    b5 = jax.random.normal(k[5], (dim,), jnp.float32) * 0.1

    # --- Conv2d_cd.get_weight(): center tap = w[4] - sum(all 9) ---
    w1_flat = w_cd_base.reshape(dim, dim, 9)
    center = w1_flat[:, :, 4] - w1_flat.sum(axis=2)
    w1_flat = w1_flat.at[:, :, 4].set(center)
    w1 = w1_flat.reshape(dim, dim, 3, 3)

    # --- Conv2d_hd.get_weight(): cols [0,3,6] = w, cols [2,5,8] = -w ---
    w2_flat = jnp.zeros((dim, dim, 9), jnp.float32)
    w2_flat = w2_flat.at[:, :, jnp.array([0, 3, 6])].set(w_hd_base)
    w2_flat = w2_flat.at[:, :, jnp.array([2, 5, 8])].set(-w_hd_base)
    w2 = w2_flat.reshape(dim, dim, 3, 3)

    # --- DEConv.forward combination (w3/w4 are computed upstream but unused) ---
    w = w1 + w2 + w5          # OIHW
    b = b1 + b2 + b5
    return w, b


if __name__ == "__main__":
    key = jax.random.PRNGKey(0)
    kx, kp = jax.random.split(key)

    N, C, H, W = 2, 4, 16, 16
    x = jax.random.normal(kx, (N, C, H, W), jnp.float32)
    w, b = make_deconv_params(C, kp)

    out = deconv_forward(x, w, b)
    out = jax.block_until_ready(out)

    # Reference check with XLA's conv (same semantics as F.conv2d padding=1).
    ref = jax.lax.conv_general_dilated(
        x, w, window_strides=(1, 1), padding=((1, 1), (1, 1)),
        dimension_numbers=("NCHW", "OIHW", "NCHW"))
    ref = ref + b.reshape(1, C, 1, 1)

    assert out.shape == (N, C, H, W)
    max_err = float(jnp.max(jnp.abs(out - ref)))
    assert jnp.allclose(out, ref, atol=1e-3, rtol=1e-3), max_err
    print("KERNEL_OK")
</pallas_src>

<mosaic_0001>
module attributes {stable_mosaic.version = 11 : i64} {
  func.func @_deconv3x3_kernel(%arg0: i32, %arg1: memref<1x4x256xf32, #tpu.memory_space<vmem>>, %arg2: memref<4x36xf32, #tpu.memory_space<vmem>>, %arg3: memref<4x1xf32, #tpu.memory_space<vmem>>, %arg4: memref<1x4x256xf32, #tpu.memory_space<vmem>>, %arg5: memref<4x290xf32, #tpu.memory_space<vmem>>, %arg6: memref<36x256xf32, #tpu.memory_space<vmem>>) attributes {dimension_semantics = [#tpu.dimension_semantics<parallel>], iteration_bounds = array<i64: 2>, scalar_prefetch = 0 : i64, scratch_operands = 2 : i64, tpu.core_type = #tpu.core_type<tc>, window_params = [{transform_indices = @transform_0, window_bounds = array<i64: 1, 4, 256>}, {pipeline_mode = #tpu.pipeline_mode<synchronous>, transform_indices = @transform_1, window_bounds = array<i64: 4, 36>}, {pipeline_mode = #tpu.pipeline_mode<synchronous>, transform_indices = @transform_2, window_bounds = array<i64: 4, 1>}, {transform_indices = @transform_3, window_bounds = array<i64: 1, 4, 256>}]} {
    %cst = arith.constant 0.000000e+00 : f32
    %0 = vector.broadcast %cst : f32 to vector<4x290xf32>
    %c0 = arith.constant 0 : index
    %c0_0 = arith.constant 0 : index
    %1 = vector.load %arg5[%c0, %c0_0] : memref<4x290xf32, #tpu.memory_space<vmem>>, vector<4x290xf32>
    tpu.vector_store %arg5[%c0, %c0_0], %0 {strides = array<i32>} : memref<4x290xf32, #tpu.memory_space<vmem>>, vector<4x290xf32>,
    %c0_1 = arith.constant 0 : index
    %c0_2 = arith.constant 0 : index
    %c0_3 = arith.constant 0 : index
    %2 = vector.load %arg1[%c0_1, %c0_2, %c0_3] : memref<1x4x256xf32, #tpu.memory_space<vmem>>, vector<1x4x256xf32>
    %3 = vector.shape_cast %2 : vector<1x4x256xf32> to vector<4x256xf32>
    %c0_4 = arith.constant 0 : index
    %c17 = arith.constant 17 : index
    %4 = vector.load %arg5[%c0_4, %c17] : memref<4x290xf32, #tpu.memory_space<vmem>>, vector<4x256xf32>
    tpu.vector_store %arg5[%c0_4, %c17], %3 {strides = array<i32>} : memref<4x290xf32, #tpu.memory_space<vmem>>, vector<4x256xf32>,
    %5 = tpu.iota {dimensions = array<i32: 1>} : vector<4x256xi32>
    %c16_i32 = arith.constant 16 : i32
    %c0_i32 = arith.constant 0 : i32
    %6 = arith.cmpi eq, %c16_i32, %c0_i32 : i32
    %c1_i32 = arith.constant 1 : i32
    %7 = arith.select %6, %c1_i32, %c16_i32 : i32
    %8 = vector.broadcast %7 : i32 to vector<4x256xi32>
    %9 = arith.remsi %5, %8 : vector<4x256xi32>
    %c0_i32_5 = arith.constant 0 : i32
    %10 = vector.broadcast %c0_i32_5 : i32 to vector<4x256xi32>
    %11 = arith.cmpi ne, %9, %10 : vector<4x256xi32>
    %c0_i32_6 = arith.constant 0 : i32
    %12 = vector.broadcast %c0_i32_6 : i32 to vector<4x256xi32>
    %13 = arith.cmpi slt, %9, %12 : vector<4x256xi32>
    %c0_i32_7 = arith.constant 0 : i32
    %14 = arith.cmpi slt, %7, %c0_i32_7 : i32
    %15 = vector.broadcast %14 : i1 to vector<4x256xi1>
    %16 = vector.broadcast %15 : vector<4x256xi1> to vector<4x256xi1>
    %17 = arith.xori %13, %16 : vector<4x256xi1>
    %18 = arith.andi %17, %11 : vector<4x256xi1>
    %19 = vector.broadcast %7 : i32 to vector<4x256xi32>
    %20 = arith.addi %9, %19 : vector<4x256xi32>
    %21 = arith.select %18, %20, %9 : vector<4x256xi1>, vector<4x256xi32>
    %c0_8 = arith.constant 0 : index
    %c0_9 = arith.constant 0 : index
    %22 = vector.load %arg5[%c0_8, %c0_9] : memref<4x290xf32, #tpu.memory_space<vmem>>, vector<4x256xf32>
    %c1_i32_10 = arith.constant 1 : i32
    %23 = vector.broadcast %c1_i32_10 : i32 to vector<4x256xi32>
    %24 = arith.cmpi sge, %21, %23 : vector<4x256xi32>
    %cst_11 = arith.constant 0.000000e+00 : f32
    %25 = vector.broadcast %cst_11 : f32 to vector<4x256xf32>
    %26 = arith.select %24, %22, %25 : vector<4x256xi1>, vector<4x256xf32>
    %c0_12 = arith.constant 0 : index
    %c0_13 = arith.constant 0 : index
    %27 = vector.load %arg6[%c0_12, %c0_13] : memref<36x256xf32, #tpu.memory_space<vmem>>, vector<4x256xf32>
    tpu.vector_store %arg6[%c0_12, %c0_13], %26 {strides = array<i32>} : memref<36x256xf32, #tpu.memory_space<vmem>>, vector<4x256xf32>,
    %c0_14 = arith.constant 0 : index
    %c1 = arith.constant 1 : index
    %28 = vector.load %arg5[%c0_14, %c1] : memref<4x290xf32, #tpu.memory_space<vmem>>, vector<4x256xf32>
    %c4 = arith.constant 4 : index
    %c0_15 = arith.constant 0 : index
    %29 = vector.load %arg6[%c4, %c0_15] : memref<36x256xf32, #tpu.memory_space<vmem>>, vector<4x256xf32>
    tpu.vector_store %arg6[%c4, %c0_15], %28 {strides = array<i32>} : memref<36x256xf32, #tpu.memory_space<vmem>>, vector<4x256xf32>,
    %c0_16 = arith.constant 0 : index
    %c2 = arith.constant 2 : index
    %30 = vector.load %arg5[%c0_16, %c2] : memref<4x290xf32, #tpu.memory_space<vmem>>, vector<4x256xf32>
    %c14_i32 = arith.constant 14 : i32
    %31 = vector.broadcast %c14_i32 : i32 to vector<4x256xi32>
    %32 = arith.cmpi sle, %21, %31 : vector<4x256xi32>
    %cst_17 = arith.constant 0.000000e+00 : f32
    %33 = vector.broadcast %cst_17 : f32 to vector<4x256xf32>
    %34 = arith.select %32, %30, %33 : vector<4x256xi1>, vector<4x256xf32>
    %c8 = arith.constant 8 : index
    %c0_18 = arith.constant 0 : index
    %35 = vector.load %arg6[%c8, %c0_18] : memref<36x256xf32, #tpu.memory_space<vmem>>, vector<4x256xf32>
    tpu.vector_store %arg6[%c8, %c0_18], %34 {strides = array<i32>} : memref<36x256xf32, #tpu.memory_space<vmem>>, vector<4x256xf32>,
    %c0_19 = arith.constant 0 : index
    %c16 = arith.constant 16 : index
    %36 = vector.load %arg5[%c0_19, %c16] : memref<4x290xf32, #tpu.memory_space<vmem>>, vector<4x256xf32>
    %c1_i32_20 = arith.constant 1 : i32
    %37 = vector.broadcast %c1_i32_20 : i32 to vector<4x256xi32>
    %38 = arith.cmpi sge, %21, %37 : vector<4x256xi32>
    %cst_21 = arith.constant 0.000000e+00 : f32
    %39 = vector.broadcast %cst_21 : f32 to vector<4x256xf32>
    %40 = arith.select %38, %36, %39 : vector<4x256xi1>, vector<4x256xf32>
    %c12 = arith.constant 12 : index
    %c0_22 = arith.constant 0 : index
    %41 = vector.load %arg6[%c12, %c0_22] : memref<36x256xf32, #tpu.memory_space<vmem>>, vector<4x256xf32>
    tpu.vector_store %arg6[%c12, %c0_22], %40 {strides = array<i32>} : memref<36x256xf32, #tpu.memory_space<vmem>>, vector<4x256xf32>,
    %c0_23 = arith.constant 0 : index
    %c17_24 = arith.constant 17 : index
    %42 = vector.load %arg5[%c0_23, %c17_24] : memref<4x290xf32, #tpu.memory_space<vmem>>, vector<4x256xf32>
    %c16_25 = arith.constant 16 : index
    %c0_26 = arith.constant 0 : index
    %43 = vector.load %arg6[%c16_25, %c0_26] : memref<36x256xf32, #tpu.memory_space<vmem>>, vector<4x256xf32>
    tpu.vector_store %arg6[%c16_25, %c0_26], %42 {strides = array<i32>} : memref<36x256xf32, #tpu.memory_space<vmem>>, vector<4x256xf32>,
    %c0_27 = arith.constant 0 : index
    %c18 = arith.constant 18 : index
    %44 = vector.load %arg5[%c0_27, %c18] : memref<4x290xf32, #tpu.memory_space<vmem>>, vector<4x256xf32>
    %c14_i32_28 = arith.constant 14 : i32
    %45 = vector.broadcast %c14_i32_28 : i32 to vector<4x256xi32>
    %46 = arith.cmpi sle, %21, %45 : vector<4x256xi32>
    %cst_29 = arith.constant 0.000000e+00 : f32
    %47 = vector.broadcast %cst_29 : f32 to vector<4x256xf32>
    %48 = arith.select %46, %44, %47 : vector<4x256xi1>, vector<4x256xf32>
    %c20 = arith.constant 20 : index
    %c0_30 = arith.constant 0 : index
    %49 = vector.load %arg6[%c20, %c0_30] : memref<36x256xf32, #tpu.memory_space<vmem>>, vector<4x256xf32>
    tpu.vector_store %arg6[%c20, %c0_30], %48 {strides = array<i32>} : memref<36x256xf32, #tpu.memory_space<vmem>>, vector<4x256xf32>,
    %c0_31 = arith.constant 0 : index
    %c32 = arith.constant 32 : index
    %50 = vector.load %arg5[%c0_31, %c32] : memref<4x290xf32, #tpu.memory_space<vmem>>, vector<4x256xf32>
    %c1_i32_32 = arith.constant 1 : i32
    %51 = vector.broadcast %c1_i32_32 : i32 to vector<4x256xi32>
    %52 = arith.cmpi sge, %21, %51 : vector<4x256xi32>
    %cst_33 = arith.constant 0.000000e+00 : f32
    %53 = vector.broadcast %cst_33 : f32 to vector<4x256xf32>
    %54 = arith.select %52, %50, %53 : vector<4x256xi1>, vector<4x256xf32>
    %c24 = arith.constant 24 : index
    %c0_34 = arith.constant 0 : index
    %55 = vector.load %arg6[%c24, %c0_34] : memref<36x256xf32, #tpu.memory_space<vmem>>, vector<4x256xf32>
    tpu.vector_store %arg6[%c24, %c0_34], %54 {strides = array<i32>} : memref<36x256xf32, #tpu.memory_space<vmem>>, vector<4x256xf32>,
    %c0_35 = arith.constant 0 : index
    %c33 = arith.constant 33 : index
    %56 = vector.load %arg5[%c0_35, %c33] : memref<4x290xf32, #tpu.memory_space<vmem>>, vector<4x256xf32>
    %c28 = arith.constant 28 : index
    %c0_36 = arith.constant 0 : index
    %57 = vector.load %arg6[%c28, %c0_36] : memref<36x256xf32, #tpu.memory_space<vmem>>, vector<4x256xf32>
    tpu.vector_store %arg6[%c28, %c0_36], %56 {strides = array<i32>} : memref<36x256xf32, #tpu.memory_space<vmem>>, vector<4x256xf32>,
    %c0_37 = arith.constant 0 : index
    %c34 = arith.constant 34 : index
    %58 = vector.load %arg5[%c0_37, %c34] : memref<4x290xf32, #tpu.memory_space<vmem>>, vector<4x256xf32>
    %c14_i32_38 = arith.constant 14 : i32
    %59 = vector.broadcast %c14_i32_38 : i32 to vector<4x256xi32>
    %60 = arith.cmpi sle, %21, %59 : vector<4x256xi32>
    %cst_39 = arith.constant 0.000000e+00 : f32
    %61 = vector.broadcast %cst_39 : f32 to vector<4x256xf32>
    %62 = arith.select %60, %58, %61 : vector<4x256xi1>, vector<4x256xf32>
    %c32_40 = arith.constant 32 : index
    %c0_41 = arith.constant 0 : index
    %63 = vector.load %arg6[%c32_40, %c0_41] : memref<36x256xf32, #tpu.memory_space<vmem>>, vector<4x256xf32>
    tpu.vector_store %arg6[%c32_40, %c0_41], %62 {strides = array<i32>} : memref<36x256xf32, #tpu.memory_space<vmem>>, vector<4x256xf32>,
    %c0_42 = arith.constant 0 : index
    %c0_43 = arith.constant 0 : index
    %64 = vector.load %arg2[%c0_42, %c0_43] : memref<4x36xf32, #tpu.memory_space<vmem>>, vector<4x36xf32>
    %c0_44 = arith.constant 0 : index
    %c0_45 = arith.constant 0 : index
    %65 = vector.load %arg6[%c0_44, %c0_45] : memref<36x256xf32, #tpu.memory_space<vmem>>, vector<36x256xf32>
    %cst_46 = arith.constant dense<0.000000e+00> : vector<4x256xf32>
    %66 = tpu.matmul %64, %65, %cst_46 {dimension_numbers = #tpu.dot_dimension_numbers<[1], [0], [0], [1], [0, 0, 1, 1], [], []>} : vector<4x36xf32>, vector<36x256xf32>, vector<4x256xf32> -> vector<4x256xf32>
    %c0_47 = arith.constant 0 : index
    %c0_48 = arith.constant 0 : index
    %67 = vector.load %arg3[%c0_47, %c0_48] : memref<4x1xf32, #tpu.memory_space<vmem>>, vector<4x1xf32>
    %68 = vector.broadcast %67 : vector<4x1xf32> to vector<4x256xf32>
    %69 = arith.addf %66, %68 : vector<4x256xf32>
    %c0_49 = arith.constant 0 : index
    %c0_50 = arith.constant 0 : index
    %c0_51 = arith.constant 0 : index
    %70 = vector.load %arg4[%c0_49, %c0_50, %c0_51] : memref<1x4x256xf32, #tpu.memory_space<vmem>>, vector<1x4x256xf32>
    %71 = vector.shape_cast %70 : vector<1x4x256xf32> to vector<4x256xf32>
    %72 = vector.shape_cast %69 : vector<4x256xf32> to vector<1x4x256xf32>
    tpu.vector_store %arg4[%c0_49, %c0_50, %c0_51], %72 {strides = array<i32>} : memref<1x4x256xf32, #tpu.memory_space<vmem>>, vector<1x4x256xf32>,
    return
  }
  func.func @transform_0(%arg0: i32) -> (i32, i32, i32) {
    %c0_i32 = arith.constant 0 : i32
    %c0_i32_0 = arith.constant 0 : i32
    %c0_i32_1 = arith.constant 0 : i32
    return %arg0, %c0_i32, %c0_i32_0 : i32, i32, i32
  }
  func.func @transform_1(%arg0: i32) -> (i32, i32) {
    %c0_i32 = arith.constant 0 : i32
    %c0_i32_0 = arith.constant 0 : i32
    %c0_i32_1 = arith.constant 0 : i32
    return %c0_i32, %c0_i32_0 : i32, i32
  }
  func.func @transform_2(%arg0: i32) -> (i32, i32) {
    %c0_i32 = arith.constant 0 : i32
    %c0_i32_0 = arith.constant 0 : i32
    %c0_i32_1 = arith.constant 0 : i32
    return %c0_i32, %c0_i32_0 : i32, i32
  }
  func.func @transform_3(%arg0: i32) -> (i32, i32, i32) {
    %c0_i32 = arith.constant 0 : i32
    %c0_i32_0 = arith.constant 0 : i32
    %c0_i32_1 = arith.constant 0 : i32
    return %arg0, %c0_i32, %c0_i32_0 : i32, i32, i32
  }
}

</mosaic_0001>

<llo_original>
// kernel: tpu_custom_call.1
$region0: #{tpu_custom_call.1}
  #allocation0 [shape = 'u32[]', space=smem, size = 0x4, offset = 0x4, fixed_abs, tag = 'smem constant byte address 0x4 - core index']
  #allocation1 [shape = 'u32[144,128]{1,0:T(1,128)}', space=vmem, size = 0x12000, scoped, tag = 'internal scratch']
  #allocation2 [shape = 'f32[4,290]{1,0:T(4,128)}', space=vmem, size = 0x1800, scoped, tag = 'scratch operand']
  #allocation3 [shape = 'f32[36,256]{1,0:T(8,128)}', space=vmem, size = 0xa000, scoped, tag = 'scratch operand']
  %s0 = inlined_call_operand.hbm [shape: f32[2,4,256], index: 0, kind: input, shape index: {}]
  %s1 = inlined_call_operand.vmem [shape: f32[4,36], index: 1, kind: input, shape index: {}]
  %s2 = inlined_call_operand.vmem [shape: f32[4,1], index: 2, kind: input, shape index: {}]
  %s3 = inlined_call_operand.hbm [shape: f32[2,4,256], index: 3, kind: output, shape index: {}]
  %s4 = sld [smem:[#allocation0]]
  $region49: #{tpu_custom_call.1} parent=0
    _
  %s6 = ssub.s32 1, %s4
  %s7 = scalar_select 0, %s6, %s4
  $region1: #{tpu_custom_call.1} parent=0
    #allocation4 [shape = 'u8[8192]{0}', space=vmem, size = 0x2000, scoped, tag = 'input window, operand 0']
    #allocation5 [shape = 's32[2]{0}', space=sflag, size = 0x8, scoped, tag = 'scoped memory for tpu_custom_call.1']
    #allocation6 [shape = 's32[2]{0}', space=sflag, size = 0x8, scoped, tag = 'scoped memory for tpu_custom_call.1']
    #allocation7 [shape = 'u8[8192]{0}', space=vmem, size = 0x2000, scoped, tag = 'output window, operand 0']
    %8 = vsyncpa [#allocation5], 0
    %s9 = scalar_lea.sflag [#allocation5], 1
    %10 = vsyncpa %s9, 0
    %11 = vsyncpa [#allocation6], 0
    %s12 = scalar_lea.sflag [#allocation6], 1
    %13 = vsyncpa %s12, 0
    loop: start=0, step=1, limit=4
    $region2: #{tpu_custom_call.1} parent=1 // loop_pre_header
      _
    $region3: #{tpu_custom_call.1} parent=1 // loop_header
      %s15 = sphi 0, %s19
      %p16 = scmp.ge.s32.totalorder %s15, 4
      %s25 = sphi 0, %s27
      %s28 = sphi 0, %s25
      %s29 = sphi 0, %s28
      %s45 = sphi 0, %s29
      %s49 = sphi 0, %s49
      %s51 = sphi 0, %s49
      %s52 = sphi 0, %s51
      %s66 = sphi 0, %s52
      %s70 = sphi 0, %s70
      %s72 = sphi 0, %s70
      %s73 = sphi 0, %s72
      %s87 = sphi 0, %s73
      %s93 = sphi 0, %s95
      %s96 = sphi 0, %s93
      %s97 = sphi 0, %s96
      %s113 = sphi 0, %s97
    $region4: #{tpu_custom_call.1} parent=1 // loop_header_branch
      %18 = sbr.rel (%p16) target = $region8
    $region5: #{tpu_custom_call.1} parent=1 // loop_body
      %s20 = ssub.s32 %s15, 1
      %s21 = ssub.s32 %s15, 2
      %s22 = sadd.s32 %s15, 1
      %s23 = ssub.s32 %s15, %s22
      %p24 = scmp.eq.s32.totalorder %s23, 0
      %s26 = sadd.s32 %s25, 1
      %s27 = scalar_select %p24, %s25, %s26
      %p30 = pneg %p24
      %p31 = scmp.eq.s32.totalorder %s15, 1
      %p32 = por %p30, %p31
      %p33 = scmp.ne.s32.totalorder %s25, %s28
      %p34 = scmp.eq.s32.totalorder %s15, 0
      %p35 = por %p33, %p34
      %p36 = scmp.ne.s32.totalorder %s25, %s28
      %p37 = scmp.eq.s32.totalorder %s20, 1
      %p38 = por %p36, %p37
      %p39 = scmp.ne.s32.totalorder %s28, %s29
      %p40 = scmp.eq.s32.totalorder %s20, 0
      %p41 = por %p39, %p40
      %p42 = scmp.ne.s32.totalorder %s28, %s29
      %p43 = scmp.eq.s32.totalorder %s21, 1
      %p44 = por %p42, %p43
      %p46 = scmp.ne.s32.totalorder %s29, %s45
      %p47 = scmp.eq.s32.totalorder %s21, 0
      %p48 = por %p46, %p47
      %s50 = sadd.s32 %s49, 1
      %p53 = scmp.eq.s32.totalorder %s15, 1
      %p54 = scmp.ne.s32.totalorder %s49, %s51
      %p55 = scmp.eq.s32.totalorder %s15, 0
      %p56 = por %p54, %p55
      %p57 = scmp.ne.s32.totalorder %s49, %s51
      %p58 = scmp.eq.s32.totalorder %s20, 1
      %p59 = por %p57, %p58
      %p60 = scmp.ne.s32.totalorder %s51, %s52
      %p61 = scmp.eq.s32.totalorder %s20, 0
      %p62 = por %p60, %p61
      %p63 = scmp.ne.s32.totalorder %s51, %s52
      %p64 = scmp.eq.s32.totalorder %s21, 1
      %p65 = por %p63, %p64
      %p67 = scmp.ne.s32.totalorder %s52, %s66
      %p68 = scmp.eq.s32.totalorder %s21, 0
      %p69 = por %p67, %p68
      %s71 = sadd.s32 %s70, 1
      %p74 = scmp.eq.s32.totalorder %s15, 1
      %p75 = scmp.ne.s32.totalorder %s70, %s72
      %p76 = scmp.eq.s32.totalorder %s15, 0
      %p77 = por %p75, %p76
      %p78 = scmp.ne.s32.totalorder %s70, %s72
      %p79 = scmp.eq.s32.totalorder %s20, 1
      %p80 = por %p78, %p79
      %p81 = scmp.ne.s32.totalorder %s72, %s73
      %p82 = scmp.eq.s32.totalorder %s20, 0
      %p83 = por %p81, %p82
      %p84 = scmp.ne.s32.totalorder %s72, %s73
      %p85 = scmp.eq.s32.totalorder %s21, 1
      %p86 = por %p84, %p85
      %p88 = scmp.ne.s32.totalorder %s73, %s87
      %p89 = scmp.eq.s32.totalorder %s21, 0
      %p90 = por %p88, %p89
      %s91 = ssub.s32 %s15, %s22
      %p92 = scmp.eq.s32.totalorder %s91, 0
      %s94 = sadd.s32 %s93, 1
      %s95 = scalar_select %p92, %s93, %s94
      %p98 = pneg %p92
      %p99 = scmp.eq.s32.totalorder %s15, 1
      %p100 = por %p98, %p99
      %p101 = scmp.ne.s32.totalorder %s93, %s96
      %p102 = scmp.eq.s32.totalorder %s15, 0
      %p103 = por %p101, %p102
      %p104 = scmp.ne.s32.totalorder %s93, %s96
      %p105 = scmp.eq.s32.totalorder %s20, 1
      %p106 = por %p104, %p105
      %p107 = scmp.ne.s32.totalorder %s96, %s97
      %p108 = scmp.eq.s32.totalorder %s20, 0
      %p109 = por %p107, %p108
      %p110 = scmp.ne.s32.totalorder %s96, %s97
      %p111 = scmp.eq.s32.totalorder %s21, 1
      %p112 = por %p110, %p111
      %p114 = scmp.ne.s32.totalorder %s97, %s113
      %p115 = scmp.eq.s32.totalorder %s21, 0
      %p116 = por %p114, %p115
      %p117 = scmp.le.s32.totalorder 1, %s15
      %p118 = scmp.lt.s32.totalorder %s15, 3
      %p119 = pnand %p117, %p118
      %p120 = pneg %p119
      // Predicated region
      $region9: #{tpu_custom_call.1} parent=5 // pred_check
        _
      $region10: #{tpu_custom_call.1} parent=5 // pred_check_branch
        %122 = sbr.rel (%p119) target = $region12
      $region11: #{tpu_custom_call.1} parent=5 // pred_region
        %s123 = ssub.s32 %s15, 1
        // Predicated region
        $region13: #{tpu_custom_call.1} parent=11 // pred_check
          %p124 = pneg %p62
        $region14: #{tpu_custom_call.1} parent=11 // pred_check_branch
          %126 = sbr.rel (%p124) target = $region16
        $region15: #{tpu_custom_call.1} parent=11 // pred_region
          _
        $region16: #{tpu_custom_call.1} parent=11 // pred_fallthru
          _
        // Predicated region
        $region17: #{tpu_custom_call.1} parent=11 // pred_check
          %p127 = pneg %p83
        $region18: #{tpu_custom_call.1} parent=11 // pred_check_branch
          %129 = sbr.rel (%p127) target = $region20
        $region19: #{tpu_custom_call.1} parent=11 // pred_region
          _
        $region20: #{tpu_custom_call.1} parent=11 // pred_fallthru
          _
      $region12: #{tpu_custom_call.1} parent=5 // pred_fallthru
        _
      %p130 = scmp.lt.s32.totalorder %s15, 2
      // Predicated region
      $region21: #{tpu_custom_call.1} parent=5 // pred_check
        %p131 = pneg %p130
      $region22: #{tpu_custom_call.1} parent=5 // pred_check_branch
        %133 = sbr.rel (%p131) target = $region24
      $region23: #{tpu_custom_call.1} parent=5 // pred_region
        // Predicated region
        $region25: #{tpu_custom_call.1} parent=23 // pred_check
          %p134 = pneg %p35
        $region26: #{tpu_custom_call.1} parent=23 // pred_check_branch
          %136 = sbr.rel (%p134) target = $region28
        $region27: #{tpu_custom_call.1} parent=23 // pred_region
          %s137 = sand.u32 %s25, 1
          %s138 = scalar_lea.sflag [#allocation5], %s137
          %s139 = sand.u32 %s25, 1
          %s140 = smul.addr %s139, 8
          %s141 = scalar_lea.vmem [#allocation4], %s140
          %s143 = ssub.s32 128, 128
          %144 = vsyncadd %s138, %s143
          %s145 = smul.addr %s15, 2
          %s146 = smul.addr %s145, 64
          %s147 = scalar_lea.hbm %s0, %s146
          %s149 = sshll.u32 %s141, 4
          %s150 = int_to_ptr.vmem [resolvable:$true] %s149
          %152 = dma.hbm_to_vmem [thread:$0]  %s147, 128, %s150, %s138
        $region28: #{tpu_custom_call.1} parent=23 // pred_fallthru
          _
      $region24: #{tpu_custom_call.1} parent=5 // pred_fallthru
        _
      %p153 = scmp.le.s32.totalorder 1, %s15
      %p154 = scmp.lt.s32.totalorder %s15, 3
      %p155 = pnand %p153, %p154
      %p156 = pneg %p155
      // Predicated region
      $region29: #{tpu_custom_call.1} parent=5 // pred_check
        _
      $region30: #{tpu_custom_call.1} parent=5 // pred_check_branch
        %158 = sbr.rel (%p155) target = $region32
      $region31: #{tpu_custom_call.1} parent=5 // pred_region
        %s159 = ssub.s32 %s15, 1
        %s160 = sand.u32 %s28, 1
        %s161 = scalar_lea.sflag [#allocation5], %s160
        %s162 = sand.u32 %s28, 1
        %s163 = smul.addr %s162, 8
        %s164 = scalar_lea.vmem [#allocation4], %s163
        // Predicated region
        $region33: #{tpu_custom_call.1} parent=31 // pred_check
          %p165 = pneg %p41
        $region34: #{tpu_custom_call.1} parent=31 // pred_check_branch
          %167 = sbr.rel (%p165) target = $region36
        $region35: #{tpu_custom_call.1} parent=31 // pred_region
          %168 = dma.done %s161, 128
        $region36: #{tpu_custom_call.1} parent=31 // pred_fallthru
          _
        %s169 = sand.u32 %s28, 1
        %s170 = scalar_lea.sflag [#allocation5], %s169
        %s171 = sand.u32 %s28, 1
        %s172 = smul.addr %s171, 8
        %s173 = scalar_lea.vmem [#allocation4], %s172
        %p174 = pneg %p41
        %p175 = pneg %p38
        %p176 = pneg %p62
        %p177 = pneg %p59
        %p178 = pneg %p83
        %p179 = pneg %p80
        %p180 = pneg %p109
        %p181 = pneg %p106
        %s182 = sand.u32 %s96, 1
        %s183 = scalar_lea.sflag [#allocation6], %s182
        %s184 = sand.u32 %s96, 1
        %s185 = smul.addr %s184, 8
        %s186 = scalar_lea.vmem [#allocation7], %s185
        %187 = vst [vmem:[#allocation2] sm:$0xff] 0.0
        %vm188 = vcmask 273408
        %189 = vst.msk [vmem:[#allocation2 + $0x8] sm:$0xf] %vm188, 0.0
        %v190 = vld [vmem:[%s164] sm:$0xff]
        %192 = vrot.lane.b32.xlu0 %v190, 17
        %v193 = vpop.permute.xlu0 %192
        %v194 = vrot.slane %v193, 4
        %vm195 = vcmask 138240
        %v196 = vsel %vm195, %v194, %v193
        %vm199 = vcmask 1043592
        %vm200 = vcmask 1047556
        %vm201 = vmor %vm200, %vm199
        %202 = vst.msk [vmem:[#allocation2] sm:$0xff] %vm201, %v196
        %vm203 = vcmask 134144
        %204 = vst.msk [vmem:[#allocation2 + $0x8] sm:$0xf] %vm203, %v194
        %v205 = vlaneseq
        %v206 = vand.u32 %v205, 127
        %v207 = vadd.s32 %v206, 128
        %vm208 = vcmp.lt.s32.totalorder %v206, 0
        %v209 = vsub.s32 0, %v206
        %v210 = vsel %vm208, %v209, %v206
        %v211 = vshrl.u32 %v210, 4
        %v212 = vand.u32 %v210, 15
        %v213 = vsub.s32 0, %v212
        %v214 = vsel %vm208, %v213, %v212
        %vm215 = vcmp.lt.s32.totalorder %v207, 0
        %v216 = vsub.s32 0, %v207
        %v217 = vsel %vm215, %v216, %v207
        %v218 = vshrl.u32 %v217, 4
        %v219 = vand.u32 %v217, 15
        %v220 = vsub.s32 0, %v219
        %v221 = vsel %vm215, %v220, %v219
        %vm222 = vcmp.ne.s32.totalorder %v214, 0
        %vm223 = vcmp.ne.s32.totalorder %v221, 0
        %vm224 = vcmp.lt.s32.totalorder %v214, 0
        %vm225 = vcmp.lt.s32.totalorder %v221, 0
        %vm226 = vmand %vm224, %vm222
        %vm227 = vmand %vm225, %vm223
        %v228 = vadd.s32 %v214, 16
        %v229 = vadd.s32 %v221, 16
        %v230 = vsel %vm226, %v228, %v214
        %v231 = vsel %vm227, %v229, %v221
        %v232 = vld [vmem:[#allocation2] sm:$0xff]
        %vm233 = vcmp.ge.s32.totalorder %v230, 1
        %vm234 = vcmp.ge.s32.totalorder %v231, 1
        %v236 = vcombine.high %v232, %v232
        %v238 = vsel %vm233, %v232, 0.0
        %v239 = vsel %vm234, %v236, 0.0
        %240 = vst [vmem:[#allocation3] sm:$0xf] %v238
        %241 = vst [vmem:[#allocation3 + $0x8] sm:$0xf] %v239
        %v242 = vld [vmem:[#allocation2] sm:$0xff]
        %v243 = vld [vmem:[#allocation2 + $0x8] sm:$0xf]
        %v246 = vcombine.low %v242, %v242
        %v247 = vcombine.low %v243, %v243
        %248 = vrot.lane.b32.xlu0 %v246, 127
        %v249 = vpop.permute.xlu0 %248
        %250 = vrot.lane.b32.xlu0 %v242, 127
        %v251 = vpop.permute.xlu0 %250
        %252 = vrot.lane.b32.xlu0 %v247, 127
        %v253 = vpop.permute.xlu0 %252
        %vm254 = vcmask 1039360
        %v255 = vsel %vm254, %v249, %v251
        %v256 = vsel %vm254, %v251, %v253
        %259 = vst [vmem:[#allocation3] sm:$0xf0] %v255
        %260 = vst [vmem:[#allocation3 + $0x8] sm:$0xf0] %v256
        %v261 = vld [vmem:[#allocation2] sm:$0xff]
        %v262 = vld [vmem:[#allocation2 + $0x8] sm:$0xf]
        %vm263 = vcmp.le.s32.totalorder %v230, 14
        %vm264 = vcmp.le.s32.totalorder %v231, 14
        %v267 = vcombine.high %v261, %v261
        %268 = vrot.lane.b32.xlu0 %v261, 126
        %v269 = vpop.permute.xlu0 %268
        %270 = vrot.lane.b32.xlu0 %v267, 126
        %v271 = vpop.permute.xlu0 %270
        %272 = vrot.lane.b32.xlu0 %v262, 126
        %v273 = vpop.permute.xlu0 %272
        %vm274 = vcmask 1031168
        %v275 = vsel %vm274, %v269, %v271
        %v276 = vsel %vm274, %v271, %v273
        %v279 = vsel %vm263, %v275, 0.0
        %v280 = vsel %vm264, %v276, 0.0
        %281 = vst [vmem:[#allocation3 + $0x10] sm:$0xf] %v279
        %282 = vst [vmem:[#allocation3 + $0x18] sm:$0xf] %v280
        %v283 = vld [vmem:[#allocation2] sm:$0xff]
        %v284 = vld [vmem:[#allocation2 + $0x8] sm:$0xf]
        %v287 = vcombine.high %v283, %v283
        %288 = vrot.lane.b32.xlu0 %v283, 112
        %v289 = vpop.permute.xlu0 %288
        %290 = vrot.lane.b32.xlu0 %v287, 112
        %v291 = vpop.permute.xlu0 %290
        %292 = vrot.lane.b32.xlu0 %v284, 112
        %v293 = vpop.permute.xlu0 %292
        %vm294 = vcmask 916480
        %v295 = vsel %vm294, %v289, %v291
        %v296 = vsel %vm294, %v291, %v293
        %v299 = vsel %vm233, %v295, 0.0
        %v300 = vsel %vm234, %v296, 0.0
        %v303 = vrot.slane %v299, 4
        %v304 = vrot.slane %v300, 4
        %307 = vst [vmem:[#allocation3 + $0x10] sm:$0xf0] %v303
        %308 = vst [vmem:[#allocation3 + $0x18] sm:$0xf0] %v304
        %v309 = vld [vmem:[#allocation2] sm:$0xff]
        %v310 = vld [vmem:[#allocation2 + $0x8] sm:$0xf]
        %v313 = vcombine.high %v309, %v309
        %314 = vrot.lane.b32.xlu0 %v309, 111
        %v315 = vpop.permute.xlu0 %314
        %316 = vrot.lane.b32.xlu0 %v313, 111
        %v317 = vpop.permute.xlu0 %316
        %318 = vrot.lane.b32.xlu0 %v310, 111
        %v319 = vpop.permute.xlu0 %318
        %vm320 = vcmask 908288
        %v321 = vsel %vm320, %v315, %v317
        %v322 = vsel %vm320, %v317, %v319
        %325 = vst [vmem:[#allocation3 + $0x20] sm:$0xf] %v321
        %326 = vst [vmem:[#allocation3 + $0x28] sm:$0xf] %v322
        %v327 = vld [vmem:[#allocation2] sm:$0xff]
        %v328 = vld [vmem:[#allocation2 + $0x8] sm:$0xf]
        %v331 = vcombine.high %v327, %v327
        %332 = vrot.lane.b32.xlu0 %v327, 110
        %v333 = vpop.permute.xlu0 %332
        %334 = vrot.lane.b32.xlu0 %v331, 110
        %v335 = vpop.permute.xlu0 %334
        %336 = vrot.lane.b32.xlu0 %v328, 110
        %v337 = vpop.permute.xlu0 %336
        %vm338 = vcmask 900096
        %v339 = vsel %vm338, %v333, %v335
        %v340 = vsel %vm338, %v335, %v337
        %v343 = vsel %vm263, %v339, 0.0
        %v344 = vsel %vm264, %v340, 0.0
        %v347 = vrot.slane %v343, 4
        %v348 = vrot.slane %v344, 4
        %351 = vst [vmem:[#allocation3 + $0x20] sm:$0xf0] %v347
        %352 = vst [vmem:[#allocation3 + $0x28] sm:$0xf0] %v348
        %v353 = vld [vmem:[#allocation2] sm:$0xff]
        %v354 = vld [vmem:[#allocation2 + $0x8] sm:$0xf]
        %v357 = vcombine.high %v353, %v353
        %358 = vrot.lane.b32.xlu0 %v353, 96
        %v359 = vpop.permute.xlu0 %358
        %360 = vrot.lane.b32.xlu0 %v357, 96
        %v361 = vpop.permute.xlu0 %360
        %362 = vrot.lane.b32.xlu0 %v354, 96
        %v363 = vpop.permute.xlu0 %362
        %vm364 = vcmask 785408
        %v365 = vsel %vm364, %v359, %v361
        %v366 = vsel %vm364, %v361, %v363
        %v369 = vsel %vm233, %v365, 0.0
        %v370 = vsel %vm234, %v366, 0.0
        %371 = vst [vmem:[#allocation3 + $0x30] sm:$0xf] %v369
        %372 = vst [vmem:[#allocation3 + $0x38] sm:$0xf] %v370
        %v373 = vld [vmem:[#allocation2] sm:$0xff]
        %v374 = vld [vmem:[#allocation2 + $0x8] sm:$0xf]
        %v377 = vcombine.low %v373, %v373
        %v378 = vcombine.low %v374, %v374
        %379 = vrot.lane.b32.xlu0 %v377, 95
        %v380 = vpop.permute.xlu0 %379
        %381 = vrot.lane.b32.xlu0 %v373, 95
        %v382 = vpop.permute.xlu0 %381
        %383 = vrot.lane.b32.xlu0 %v378, 95
        %v384 = vpop.permute.xlu0 %383
        %vm385 = vcmask 777216
        %v386 = vsel %vm385, %v380, %v382
        %v387 = vsel %vm385, %v382, %v384
        %390 = vst [vmem:[#allocation3 + $0x30] sm:$0xf0] %v386
        %391 = vst [vmem:[#allocation3 + $0x38] sm:$0xf0] %v387
        %v392 = vld [vmem:[#allocation2] sm:$0xff]
        %v393 = vld [vmem:[#allocation2 + $0x8] sm:$0xf]
        %v396 = vcombine.high %v392, %v392
        %397 = vrot.lane.b32.xlu0 %v392, 94
        %v398 = vpop.permute.xlu0 %397
        %399 = vrot.lane.b32.xlu0 %v396, 94
        %v400 = vpop.permute.xlu0 %399
        %401 = vrot.lane.b32.xlu0 %v393, 94
        %v402 = vpop.permute.xlu0 %401
        %vm403 = vcmask 769024
        %v404 = vsel %vm403, %v398, %v400
        %v405 = vsel %vm403, %v400, %v402
        %v408 = vsel %vm263, %v404, 0.0
        %v409 = vsel %vm264, %v405, 0.0
        %410 = vst [vmem:[#allocation3 + $0x40] sm:$0xf] %v408
        %411 = vst [vmem:[#allocation3 + $0x48] sm:$0xf] %v409
        %v412 = vld [vmem:[%s1] sm:$0xf]
        %v413 = vld [vmem:[#allocation3] sm:$0xff]
        %v414 = vld [vmem:[#allocation3 + $0x8] sm:$0xff]
        %v415 = vld [vmem:[#allocation3 + $0x10] sm:$0xff]
        %v416 = vld [vmem:[#allocation3 + $0x18] sm:$0xff]
        %v417 = vld [vmem:[#allocation3 + $0x20] sm:$0xff]
        %v418 = vld [vmem:[#allocation3 + $0x28] sm:$0xff]
        %v419 = vld [vmem:[#allocation3 + $0x30] sm:$0xff]
        %v420 = vld [vmem:[#allocation3 + $0x38] sm:$0xff]
        %v421 = vld [vmem:[#allocation3 + $0x40] sm:$0xf]
        %v422 = vld [vmem:[#allocation3 + $0x48] sm:$0xf]
        %v423 = vld [vmem:[%s2] sm:$0xf]
        %425 = vset.pattern.permute.xlu0 0
        %426 = vperm.xlu0 %425, %v423
        %v427 = vpop.permute.xlu0 %426
        %vm429 = vcmask 293888
        %v431 = vsel %vm429, %v412, 0
        %vm433 = vcmask 1043456
        %v435 = vsel %vm433, %v421, 0
        %v438 = vsel %vm433, %v422, 0
        %440 = vmatprep.subr.mxu0 %v414
        %441 = vmatpush1.msra.mxu0 %v413
        %442 = vmatprep.subr.mxu0 %v416
        %443 = vmatpush1.msra.mxu0 %v415
        %444 = vmatprep.subr.mxu0 %v418
        %445 = vmatpush1.msra.mxu0 %v417
        %446 = vmatprep.subr.mxu0 %v420
        %447 = vmatpush1.msra.mxu0 %v419
        %448 = vmatprep.subr.mxu0 %v438
        %449 = vmatpush1.msra.mxu0 %v435
        %450 = vmatprep.subr.mxu0 0.0
        %451 = vmatpush1.msra.mxu0 0.0
        %452 = vmatprep.subr.mxu0 0.0
        %453 = vmatpush1.msra.mxu0 0.0
        %454 = vmatprep.subr.mxu0 0.0
        %455 = vmatpush1.msra.mxu0 0.0
        %456 = vmatprep.subr.mxu0 0.0
        %457 = vmatpush1.msra.mxu0 0.0
        %458 = vmatprep.subr.mxu0 0.0
        %459 = vmatpush1.msra.mxu0 0.0
        %460 = vmatprep.subr.mxu0 0.0
        %461 = vmatpush1.msra.mxu0 0.0
        %462 = vmatprep.subr.mxu0 0.0
        %463 = vmatpush1.msra.mxu0 0.0
        %464 = vmatprep.subr.mxu0 0.0
        %465 = vmatpush1.msra.mxu0 0.0
        %466 = vmatprep.subr.mxu0 0.0
        %467 = vmatpush1.msra.mxu0 0.0
        %468 = vmatprep.subr.mxu0 0.0
        %469 = vmatpush1.msra.mxu0 0.0
        %470 = vmatprep.subr.mxu0 0.0
        %471 = vmatpush1.msra.mxu0 0.0
        %472 = vmatprep.subr.mxu0 0.0
        %473 = vmatpush1.msra.mxu0 0.0
        %474 = vmatprep.subr.mxu0 0.0
        %475 = vmatpush1.msra.mxu0 0.0
        %476 = vmatprep.subr.mxu0 0.0
        %477 = vmatpush1.msra.mxu0 0.0
        %478 = vmatprep.subr.mxu0 0.0
        %479 = vmatpush1.msra.mxu0 0.0
        %480 = vmatprep.subr.mxu0 0.0
        %481 = vmatpush1.msra.mxu0 0.0
        %482 = vmatprep.subr.mxu0 0.0
        %483 = vmatpush1.msra.mxu0 0.0
        %484 = vmatprep.subr.mxu0 0.0
        %485 = vmatpush1.msra.mxu0 0.0
        %486 = vmatprep.subr.mxu0 0.0
        %487 = vmatpush1.msra.mxu0 0.0
        %488 = vmatprep.subr.mxu0 0.0
        %489 = vmatpush1.msra.mxu0 0.0
        %490 = vmatprep.subr.mxu0 0.0
        %491 = vmatpush1.msra.mxu0 0.0
        %492 = vmatprep.subr.mxu0 0.0
        %493 = vmatpush1.msra.mxu0 0.0
        %494 = vmatprep.subr.mxu0 0.0
        %495 = vmatpush1.msra.mxu0 0.0
        %496 = vmatprep.subr.mxu0 0.0
        %497 = vmatpush1.msra.mxu0 0.0
        %498 = vmatprep.subr.mxu0 0.0
        %499 = vmatpush1.msra.mxu0 0.0
        %500 = vmatprep.subr.mxu0 0.0
        %501 = vmatpush1.msra.mxu0 0.0
        %502 = vmatprep.subr.mxu0 0.0
        %503 = vmatpush1.msra.mxu0 0.0
        %504 = vmatprep.mubr.f32.mxu0 0.0
        %505 = vmatmul.mubr.f32.gmra.mrb[0].mxu0 %v431
        %v506 = vpop.f32.mrb[0].mxu0
        %v507 = vadd.f32 %v427, %v506
        %v508 = vpop.f32.mrb[0].mxu0
        %v509 = vadd.f32 %v427, %v508
        %510 = vdwg.mxu0
        %v513 = vcombine.low %v507, %v509
        %515 = vst [vmem:[%s186] sm:$0xff] %v513
        %s516 = sand.u32 %s96, 1
        %s517 = scalar_lea.sflag [#allocation6], %s516
        %s518 = sand.u32 %s96, 1
        %s519 = smul.addr %s518, 8
        %s520 = scalar_lea.vmem [#allocation7], %s519
        // Predicated region
        $region37: #{tpu_custom_call.1} parent=31 // pred_check
          %p521 = pneg %p106
        $region38: #{tpu_custom_call.1} parent=31 // pred_check_branch
          %523 = sbr.rel (%p521) target = $region40
        $region39: #{tpu_custom_call.1} parent=31 // pred_region
          %s525 = ssub.s32 128, 128
          %526 = vsyncadd %s517, %s525
          %s527 = smul.addr %s20, 2
          %s528 = smul.addr %s527, 64
          %s529 = scalar_lea.hbm %s3, %s528
          %s531 = sshll.u32 %s520, 4
          %s532 = int_to_ptr.vmem [resolvable:$true] %s531
          %534 = dma.vmem_to_hbm [thread:$0]  %s532, 128, %s529, %s517
        $region40: #{tpu_custom_call.1} parent=31 // pred_fallthru
          _
      $region32: #{tpu_custom_call.1} parent=5 // pred_fallthru
        _
      %p535 = scmp.le.s32.totalorder 2, %s15
      // Predicated region
      $region41: #{tpu_custom_call.1} parent=5 // pred_check
        %p536 = pneg %p535
      $region42: #{tpu_custom_call.1} parent=5 // pred_check_branch
        %538 = sbr.rel (%p536) target = $region44
      $region43: #{tpu_custom_call.1} parent=5 // pred_region
        %s539 = ssub.s32 %s15, 2
        // Predicated region
        $region45: #{tpu_custom_call.1} parent=43 // pred_check
          %p540 = pneg %p112
        $region46: #{tpu_custom_call.1} parent=43 // pred_check_branch
          %542 = sbr.rel (%p540) target = $region48
        $region47: #{tpu_custom_call.1} parent=43 // pred_region
          %s543 = sand.u32 %s97, 1
          %s544 = scalar_lea.sflag [#allocation6], %s543
          %s545 = sand.u32 %s97, 1
          %s546 = smul.addr %s545, 8
          %s547 = scalar_lea.vmem [#allocation7], %s546
          %548 = dma.done %s544, 128
        $region48: #{tpu_custom_call.1} parent=43 // pred_fallthru
          _
      $region44: #{tpu_custom_call.1} parent=5 // pred_fallthru
        _
    $region6: #{tpu_custom_call.1} parent=1 // loop_footer
      %s19 = sadd.s32 1, %s15
    $region7: #{tpu_custom_call.1} parent=1 // loop_footer_branch
      %14 = sbr.rel target = $region3
    $region8: #{tpu_custom_call.1} parent=1 // loop_exit
      _
    %549 = vsyncpa [#allocation5], 1
    %s550 = scalar_lea.sflag [#allocation5], 1
    %551 = vsyncpa %s550, 1
    %552 = vsyncpa [#allocation6], 1
    %s553 = scalar_lea.sflag [#allocation6], 1
    %554 = vsyncpa %s553, 1

</llo_original>
